<compile_context>
chip_gen: v5e
topology: v5e:2x2
jax: 0.10.0
libtpu: 0.0.40
codegen_flags: <defaults>
</compile_context>

<pallas_src>
import functools

import jax
import jax.numpy as jnp
from jax.experimental import pallas as pl
from jax.experimental.pallas import tpu as pltpu

NFEAT = 10                    # input features per row (torch layout)
SKIP = 3                      # first 3 features are ignored
IN_FEATURES = NFEAT - SKIP    # 7
LANES = 128                   # batch elements per lane row
MAX_TILE_R = 512              # sublane rows per grid step: 512*128 = 65536 rows,
                              # ~1.75 MiB useful input / step, ~4 MiB VMEM double-buffered
                              # (fits the 32 MiB scoped default on v5e/v6e/v7x)


def _round_up(x, m):
    return (x + m - 1) // m * m


def _pick_tile_r(R, max_tile_r=MAX_TILE_R):
    """Tile the R (sublane-row) axis.

    Big enough that per-step DMA dominates the ~0.35 us/step grid overhead,
    small enough that the 'parallel' grid has >= 2 blocks whenever there is
    enough work (v7x shards the parallel axis across its 2 TensorCores).
    Returns either R itself (full-extent block) or a multiple of 8.
    """
    if R <= 8:
        return R                                        # single full-extent block
    tile = min(max_tile_r, _round_up(pl.cdiv(R, 2), 8))
    return min(tile, R)


def _linear_energy_kernel(wb_ref, x_ref, o_ref):
    # wb_ref: [8]                        SMEM  (w[0..6], bias)
    # x_ref:  [IN_FEATURES, tile_r, 128] VMEM  feature-major, batch lane-dense
    # o_ref:  [tile_r, 128]              VMEM  lane-dense output tile
    #
    # 7 scalar-weight FMAs over full [tile_r, 128] vreg planes (pure VPU);
    # bias is folded into the first term.
    acc = x_ref[0] * wb_ref[0] + wb_ref[IN_FEATURES]
    for k in range(1, IN_FEATURES):
        acc = acc + x_ref[k] * wb_ref[k]
    o_ref[...] = acc


def linear_energy_feature_major(x_fm, wb, *, max_tile_r=MAX_TILE_R):
    """Core pallas_call.

    x_fm: [IN_FEATURES, R, 128] f32, feature-major / batch lane-dense.
    wb:   [IN_FEATURES + 1] f32  (7 weights then bias).
    Returns [R, 128] f32.
    """
    nfeat, R, lanes = x_fm.shape
    assert nfeat == IN_FEATURES and lanes == LANES
    tile_r = _pick_tile_r(R, max_tile_r)
    n_blocks = pl.cdiv(R, tile_r)       # ragged last block handled by Pallas masking

    return pl.pallas_call(
        _linear_energy_kernel,
        out_shape=jax.ShapeDtypeStruct((R, LANES), jnp.float32),
        grid=(n_blocks,),
        in_specs=[
            pl.BlockSpec(memory_space=pltpu.SMEM),                          # weights + bias
            pl.BlockSpec((IN_FEATURES, tile_r, LANES), lambda i: (0, i, 0)),
        ],
        out_specs=pl.BlockSpec((tile_r, LANES), lambda i: (i, 0)),
        compiler_params=pltpu.CompilerParams(
            dimension_semantics=("parallel",),
        ),
    )(wb, x_fm)


@functools.partial(jax.jit, static_argnames=("max_tile_r",))
def linear_energy_cell_type_only(x, weight, bias, *, max_tile_r=MAX_TILE_R):
    """x: [B, 10] (torch layout); weight: [1, 7] (torch [out,in]); bias: [1] -> [B] f32."""
    B, nfeat = x.shape
    assert nfeat == NFEAT
    if B == 0:
        return jnp.zeros((0,), jnp.float32)

    # One fused XLA pass: drop the 3 unused features, go feature-major
    # (batch on the minor axis), pad the batch only up to a lane multiple
    # (<= 127 rows).  The reshape to [7, R, 128] is a free view.
    # TODO(synk): if the producer can emit feature-major (and/or bf16) data,
    # feed linear_energy_feature_major() directly and skip this copy.
    cols = _round_up(B, LANES)
    xt = x[:, SKIP:].astype(jnp.float32).T                  # [7, B]
    if cols != B:
        xt = jnp.pad(xt, ((0, 0), (0, cols - B)))
    R = cols // LANES
    x_fm = xt.reshape(IN_FEATURES, R, LANES)                # free view

    wb = jnp.concatenate(
        [weight.reshape(IN_FEATURES), bias.reshape(1)]).astype(jnp.float32)

    out = linear_energy_feature_major(x_fm, wb, max_tile_r=max_tile_r)
    # [R, 128] -> [cols] -> [B]    (== torch.squeeze(..., dim=1))
    return out.reshape(cols)[:B]


def _reference(x, weight, bias):
    w = weight.reshape(IN_FEATURES).astype(jnp.float32)
    return x[:, SKIP:].astype(jnp.float32) @ w + bias.astype(jnp.float32)[0]


if __name__ == "__main__":
    key = jax.random.PRNGKey(0)
    kx, kw, kb = jax.random.split(key, 3)

    # Deterministic params (matches nn.Linear's uniform(-1/sqrt(7), 1/sqrt(7)) init).
    bound = 1.0 / (IN_FEATURES ** 0.5)
    weight = jax.random.uniform(kw, (1, IN_FEATURES), dtype=jnp.float32,
                                minval=-bound, maxval=bound)   # torch layout [out, in]
    bias = jax.random.uniform(kb, (1,), dtype=jnp.float32,
                              minval=-bound, maxval=bound)

    # B=300: lane-misaligned batch, single full-extent block.
    # B=5000: multi-block grid with a ragged (partial) last block.
    for B in (300, 5000):
        x = jax.random.normal(kx, (B, NFEAT), dtype=jnp.float32)
        out = jax.block_until_ready(linear_energy_cell_type_only(x, weight, bias))
        ref = _reference(x, weight, bias)
        assert out.shape == (B,), out.shape
        assert jnp.allclose(out, ref, atol=1e-5, rtol=1e-5)

    print("KERNEL_OK")
</pallas_src>

<mosaic_0001>
module attributes {stable_mosaic.version = 11 : i64} {
  func.func @_linear_energy_kernel(%arg0: i32, %arg1: memref<8xf32, #tpu.memory_space<smem>>, %arg2: memref<7x3x128xf32, #tpu.memory_space<vmem>>, %arg3: memref<3x128xf32, #tpu.memory_space<vmem>>) attributes {dimension_semantics = [#tpu.dimension_semantics<parallel>], iteration_bounds = array<i64: 1>, scalar_prefetch = 0 : i64, scratch_operands = 0 : i64, tpu.core_type = #tpu.core_type<tc>, window_params = [{transform_indices = @transform_0, window_bounds = array<i64: 8>}, {transform_indices = @transform_1, window_bounds = array<i64: 7, 3, 128>}, {transform_indices = @transform_2, window_bounds = array<i64: 3, 128>}]} {
    %c0 = arith.constant 0 : index
    %c0_0 = arith.constant 0 : index
    %c0_1 = arith.constant 0 : index
    %0 = vector.load %arg2[%c0, %c0_0, %c0_1] : memref<7x3x128xf32, #tpu.memory_space<vmem>>, vector<1x3x128xf32>
    %1 = vector.shape_cast %0 : vector<1x3x128xf32> to vector<3x128xf32>
    %c0_2 = arith.constant 0 : index
    %2 = memref.load %arg1[%c0_2] : memref<8xf32, #tpu.memory_space<smem>>
    %3 = vector.broadcast %2 : f32 to vector<3x128xf32>
    %4 = arith.mulf %1, %3 : vector<3x128xf32>
    %c7 = arith.constant 7 : index
    %5 = memref.load %arg1[%c7] : memref<8xf32, #tpu.memory_space<smem>>
    %6 = vector.broadcast %5 : f32 to vector<3x128xf32>
    %7 = arith.addf %4, %6 : vector<3x128xf32>
    %c1 = arith.constant 1 : index
    %c0_3 = arith.constant 0 : index
    %c0_4 = arith.constant 0 : index
    %8 = vector.load %arg2[%c1, %c0_3, %c0_4] : memref<7x3x128xf32, #tpu.memory_space<vmem>>, vector<1x3x128xf32>
    %9 = vector.shape_cast %8 : vector<1x3x128xf32> to vector<3x128xf32>
    %c1_5 = arith.constant 1 : index
    %10 = memref.load %arg1[%c1_5] : memref<8xf32, #tpu.memory_space<smem>>
    %11 = vector.broadcast %10 : f32 to vector<3x128xf32>
    %12 = arith.mulf %9, %11 : vector<3x128xf32>
    %13 = arith.addf %7, %12 : vector<3x128xf32>
    %c2 = arith.constant 2 : index
    %c0_6 = arith.constant 0 : index
    %c0_7 = arith.constant 0 : index
    %14 = vector.load %arg2[%c2, %c0_6, %c0_7] : memref<7x3x128xf32, #tpu.memory_space<vmem>>, vector<1x3x128xf32>
    %15 = vector.shape_cast %14 : vector<1x3x128xf32> to vector<3x128xf32>
    %c2_8 = arith.constant 2 : index
    %16 = memref.load %arg1[%c2_8] : memref<8xf32, #tpu.memory_space<smem>>
    %17 = vector.broadcast %16 : f32 to vector<3x128xf32>
    %18 = arith.mulf %15, %17 : vector<3x128xf32>
    %19 = arith.addf %13, %18 : vector<3x128xf32>
    %c3 = arith.constant 3 : index
    %c0_9 = arith.constant 0 : index
    %c0_10 = arith.constant 0 : index
    %20 = vector.load %arg2[%c3, %c0_9, %c0_10] : memref<7x3x128xf32, #tpu.memory_space<vmem>>, vector<1x3x128xf32>
    %21 = vector.shape_cast %20 : vector<1x3x128xf32> to vector<3x128xf32>
    %c3_11 = arith.constant 3 : index
    %22 = memref.load %arg1[%c3_11] : memref<8xf32, #tpu.memory_space<smem>>
    %23 = vector.broadcast %22 : f32 to vector<3x128xf32>
    %24 = arith.mulf %21, %23 : vector<3x128xf32>
    %25 = arith.addf %19, %24 : vector<3x128xf32>
    %c4 = arith.constant 4 : index
    %c0_12 = arith.constant 0 : index
    %c0_13 = arith.constant 0 : index
    %26 = vector.load %arg2[%c4, %c0_12, %c0_13] : memref<7x3x128xf32, #tpu.memory_space<vmem>>, vector<1x3x128xf32>
    %27 = vector.shape_cast %26 : vector<1x3x128xf32> to vector<3x128xf32>
    %c4_14 = arith.constant 4 : index
    %28 = memref.load %arg1[%c4_14] : memref<8xf32, #tpu.memory_space<smem>>
    %29 = vector.broadcast %28 : f32 to vector<3x128xf32>
    %30 = arith.mulf %27, %29 : vector<3x128xf32>
    %31 = arith.addf %25, %30 : vector<3x128xf32>
    %c5 = arith.constant 5 : index
    %c0_15 = arith.constant 0 : index
    %c0_16 = arith.constant 0 : index
    %32 = vector.load %arg2[%c5, %c0_15, %c0_16] : memref<7x3x128xf32, #tpu.memory_space<vmem>>, vector<1x3x128xf32>
    %33 = vector.shape_cast %32 : vector<1x3x128xf32> to vector<3x128xf32>
    %c5_17 = arith.constant 5 : index
    %34 = memref.load %arg1[%c5_17] : memref<8xf32, #tpu.memory_space<smem>>
    %35 = vector.broadcast %34 : f32 to vector<3x128xf32>
    %36 = arith.mulf %33, %35 : vector<3x128xf32>
    %37 = arith.addf %31, %36 : vector<3x128xf32>
    %c6 = arith.constant 6 : index
    %c0_18 = arith.constant 0 : index
    %c0_19 = arith.constant 0 : index
    %38 = vector.load %arg2[%c6, %c0_18, %c0_19] : memref<7x3x128xf32, #tpu.memory_space<vmem>>, vector<1x3x128xf32>
    %39 = vector.shape_cast %38 : vector<1x3x128xf32> to vector<3x128xf32>
    %c6_20 = arith.constant 6 : index
    %40 = memref.load %arg1[%c6_20] : memref<8xf32, #tpu.memory_space<smem>>
    %41 = vector.broadcast %40 : f32 to vector<3x128xf32>
    %42 = arith.mulf %39, %41 : vector<3x128xf32>
    %43 = arith.addf %37, %42 : vector<3x128xf32>
    %c0_21 = arith.constant 0 : index
    %c0_22 = arith.constant 0 : index
    %44 = vector.load %arg3[%c0_21, %c0_22] : memref<3x128xf32, #tpu.memory_space<vmem>>, vector<3x128xf32>
    tpu.vector_store %arg3[%c0_21, %c0_22], %43 {strides = array<i32>} : memref<3x128xf32, #tpu.memory_space<vmem>>, vector<3x128xf32>,
    return
  }
  func.func @transform_0(%arg0: i32) -> i32 {
    %c0_i32 = arith.constant 0 : i32
    %c0_i32_0 = arith.constant 0 : i32
    return %c0_i32 : i32
  }
  func.func @transform_1(%arg0: i32) -> (i32, i32, i32) {
    %c0_i32 = arith.constant 0 : i32
    %c0_i32_0 = arith.constant 0 : i32
    %c0_i32_1 = arith.constant 0 : i32
    return %c0_i32, %arg0, %c0_i32_0 : i32, i32, i32
  }
  func.func @transform_2(%arg0: i32) -> (i32, i32) {
    %c0_i32 = arith.constant 0 : i32
    %c0_i32_0 = arith.constant 0 : i32
    return %arg0, %c0_i32 : i32, i32
  }
}

</mosaic_0001>

<llo_original>
// kernel: linear_energy_cell_type_only.1
$region0: #{linear_energy_cell_type_only.1}
  #allocation0 [shape = 'u32[]', space=smem, size = 0x4, offset = 0x4, fixed_abs, tag = 'smem constant byte address 0x4 - core index']
  #allocation1 [shape = 'u32[72,128]{1,0:T(1,128)}', space=vmem, size = 0x9000, scoped, tag = 'internal scratch']
  %s0 = inlined_call_operand.vmem [shape: f32[8], index: 0, kind: input, shape index: {}]
  %s1 = inlined_call_operand.vmem [shape: f32[7,3,128], index: 1, kind: input, shape index: {}]
  %s2 = inlined_call_operand.hbm [shape: f32[3,128], index: 2, kind: output, shape index: {}]
  %s3 = sld [smem:[#allocation0]]
  $region22: #{linear_energy_cell_type_only.1} parent=0
    _
  %s5 = ssub.s32 1, %s3
  %s6 = scalar_select 0, %s5, %s3
  $region1: #{linear_energy_cell_type_only.1} parent=0
    #allocation2 [shape = 'u8[512]{0}', space=smem, size = 0x200, scoped, tag = 'input window, operand 0, single buffered']
    #allocation3 [shape = 's32[1]{0}', space=sflag, size = 0x4, scoped, tag = 'scoped memory for linear_energy_cell_type_only.1']
    #allocation4 [shape = 's32[1]{0}', space=sflag, size = 0x4, scoped, tag = 'scoped memory for linear_energy_cell_type_only.1']
    #allocation5 [shape = 'u8[2048]{0}', space=vmem, size = 0x800, scoped, tag = 'output window, operand 0, single buffered']
    %7 = vsyncpa [#allocation4], 0
    %8 = vsyncpa [#allocation3], 0
    // Predicated region
    $region2: #{linear_energy_cell_type_only.1} parent=1 // pred_check
      _
    $region3: #{linear_energy_cell_type_only.1} parent=1 // pred_check_branch
      %10 = sbr.rel (0) target = $region5
    $region4: #{linear_energy_cell_type_only.1} parent=1 // pred_region
      %12 = vsyncadd [#allocation4], 0
      %s14 = sshll.u32 %s0, 4
      %s15 = int_to_ptr.vmem [resolvable:$true] %s14
      %17 = dma.vmem_to_smem %s15, 16, [#allocation2], [#allocation4]
    $region5: #{linear_energy_cell_type_only.1} parent=1 // pred_fallthru
      _
    // Predicated region
    $region6: #{linear_energy_cell_type_only.1} parent=1 // pred_check
      _
    $region7: #{linear_energy_cell_type_only.1} parent=1 // pred_check_branch
      %19 = sbr.rel (0) target = $region9
    $region8: #{linear_energy_cell_type_only.1} parent=1 // pred_region
      _
    $region9: #{linear_energy_cell_type_only.1} parent=1 // pred_fallthru
      _
    // Predicated region
    $region10: #{linear_energy_cell_type_only.1} parent=1 // pred_check
      _
    $region11: #{linear_energy_cell_type_only.1} parent=1 // pred_check_branch
      %21 = sbr.rel (0) target = $region13
    $region12: #{linear_energy_cell_type_only.1} parent=1 // pred_region
      %23 = dma.done [#allocation4], 16
    $region13: #{linear_energy_cell_type_only.1} parent=1 // pred_fallthru
      _
    %24 = sfence
    %v25 = vld [vmem:[%s1] sm:$0x7]
    %s26 = sld [smem:[#allocation2]]
    %v27 = vstv %s26
    %v28 = vmul.f32 %v25, %v27
    %s29 = sld [smem:[#allocation2 + $0x7]]
    %v30 = vstv %s29
    %v31 = vadd.f32 %v28, %v30
    %s32 = scalar_lea.vmem %s1, 4
    %v33 = vld [vmem:[%s32] sm:$0x7]
    %s34 = sld [smem:[#allocation2 + $0x1]]
    %v35 = vstv %s34
    %v36 = vmul.f32 %v33, %v35
    %v37 = vadd.f32 %v31, %v36
    %s38 = scalar_lea.vmem %s1, 8
    %v39 = vld [vmem:[%s38] sm:$0x7]
    %s40 = sld [smem:[#allocation2 + $0x2]]
    %v41 = vstv %s40
    %v42 = vmul.f32 %v39, %v41
    %v43 = vadd.f32 %v37, %v42
    %s44 = scalar_lea.vmem %s1, 12
    %v45 = vld [vmem:[%s44] sm:$0x7]
    %s46 = sld [smem:[#allocation2 + $0x3]]
    %v47 = vstv %s46
    %v48 = vmul.f32 %v45, %v47
    %v49 = vadd.f32 %v43, %v48
    %s50 = scalar_lea.vmem %s1, 16
    %v51 = vld [vmem:[%s50] sm:$0x7]
    %s52 = sld [smem:[#allocation2 + $0x4]]
    %v53 = vstv %s52
    %v54 = vmul.f32 %v51, %v53
    %v55 = vadd.f32 %v49, %v54
    %s56 = scalar_lea.vmem %s1, 20
    %v57 = vld [vmem:[%s56] sm:$0x7]
    %s58 = sld [smem:[#allocation2 + $0x5]]
    %v59 = vstv %s58
    %v60 = vmul.f32 %v57, %v59
    %v61 = vadd.f32 %v55, %v60
    %s62 = scalar_lea.vmem %s1, 24
    %v63 = vld [vmem:[%s62] sm:$0x7]
    %s64 = sld [smem:[#allocation2 + $0x6]]
    %v65 = vstv %s64
    %v66 = vmul.f32 %v63, %v65
    %v67 = vadd.f32 %v61, %v66
    %68 = vst [vmem:[#allocation5] sm:$0x7] %v67
    // Predicated region
    $region14: #{linear_energy_cell_type_only.1} parent=1 // pred_check
      _
    $region15: #{linear_energy_cell_type_only.1} parent=1 // pred_check_branch
      %70 = sbr.rel (0) target = $region17
    $region16: #{linear_energy_cell_type_only.1} parent=1 // pred_region
      %72 = vsyncadd [#allocation3], 0
      %s74 = sshll.u32 [#allocation5], 4
      %s75 = int_to_ptr.vmem [resolvable:$true] %s74
      %s76 = sshll.u32 %s2, 4
      %s77 = int_to_ptr.hbm [resolvable:$true] %s76
      %79 = dma.vmem_to_hbm [thread:$0]  %s75, 64, %s77, [#allocation3]
    $region17: #{linear_energy_cell_type_only.1} parent=1 // pred_fallthru
      _
    // Predicated region
    $region18: #{linear_energy_cell_type_only.1} parent=1 // pred_check
      _
    $region19: #{linear_energy_cell_type_only.1} parent=1 // pred_check_branch
      %81 = sbr.rel (0) target = $region21
    $region20: #{linear_energy_cell_type_only.1} parent=1 // pred_region
      %83 = dma.done [#allocation3], 64
    $region21: #{linear_energy_cell_type_only.1} parent=1 // pred_fallthru
      _
    %84 = vsyncpa [#allocation3], 1
    %85 = vsyncpa [#allocation4], 1

</llo_original>
